<compile_context>
chip_gen: v5e
topology: v5e:2x2
jax: 0.10.0
libtpu: 0.0.40
codegen_flags: <defaults>
</compile_context>

<pallas_src>
import math
from functools import partial

import jax
import jax.numpy as jnp
from jax.experimental import pallas as pl
from jax.experimental.pallas import tpu as pltpu

_LANES = 128
_SUBLANE_ALIGN = 32               # whole packed tile for f32 / bf16 / int8 / fp8
_TARGET_BLOCK_BYTES = 8 << 20     # ~8 MiB per block per array
_VMEM_LIMIT_BYTES = 48 << 20      # 2 arrays x 2 buffers x 8 MiB = 32 MiB + headroom


def _copy_kernel(x_ref, o_ref):
    # Whole-tile load + store: the entire "forward" of the abstract module.
    o_ref[...] = x_ref[...]


@partial(jax.jit, static_argnums=(1, 2, 3))
def unet_forward(x: jax.Array,
                 in_channels: int,
                 out_channels: int,
                 skip_identity_copy: bool = False) -> jax.Array:
    """Pallas implementation of UNet.forward for the abstract base class.

    The base class defines no layers, so the forward is an identity mapping.
    With `skip_identity_copy=True` this returns `x` directly (the optimal,
    zero-traffic path).  Otherwise the identity is run through a tiled,
    pipelined Pallas TPU copy kernel.
    """
    del in_channels, out_channels  # __init__ stores nothing; no params exist.

    if skip_identity_copy:
        # Highest-value optimization: the forward has zero compute, so the best
        # "kernel" is no kernel at all.
        return x

    orig_shape = x.shape
    total = math.prod(orig_shape)
    dtype_bytes = jnp.dtype(x.dtype).itemsize

    # --- Present a lane-dense 2-D view.  Only a <128-element lane remainder is
    #     ever padded (rare for ML tensors); multiple-of-128 totals reshape for
    #     free with no wrapper copies. ------------------------------------
    flat = x.reshape(-1)
    rem = total % _LANES
    padded_total = total if rem == 0 else total + (_LANES - rem)
    if padded_total != total:
        # Fallback path: pads < 128 elements so the flat array reshapes to
        # (rows, 128).  This (and the matching slice on the output) is the only
        # wrapper-side copy, and it only triggers for misaligned totals.
        flat = jnp.pad(flat, (0, padded_total - total))
    rows = padded_total // _LANES
    x2d = flat.reshape(rows, _LANES)

    # --- Tile selection: ~8 MiB lane-dense [tile_rows, 128] blocks.
    #     Ragged last row-block is handled by Pallas (masked), so no padding of
    #     the row dimension is needed. -------------------------------------
    target_rows = max(_SUBLANE_ALIGN,
                      _TARGET_BLOCK_BYTES // (_LANES * dtype_bytes))
    target_rows = (target_rows // _SUBLANE_ALIGN) * _SUBLANE_ALIGN
    if rows <= target_rows:
        tile_rows = rows           # single block == full array dims (always legal)
        num_blocks = 1
    else:
        tile_rows = target_rows    # multiple of 32 -> (8,128)-legal block shape
        num_blocks = pl.cdiv(rows, tile_rows)

    out2d = pl.pallas_call(
        _copy_kernel,
        out_shape=jax.ShapeDtypeStruct((rows, _LANES), x.dtype),
        grid_spec=pltpu.PrefetchScalarGridSpec(
            num_scalar_prefetch=0,
            grid=(num_blocks,),
            in_specs=[pl.BlockSpec((tile_rows, _LANES), lambda i: (i, 0))],
            out_specs=pl.BlockSpec((tile_rows, _LANES), lambda i: (i, 0)),
        ),
        compiler_params=pltpu.CompilerParams(
            # Row blocks are independent -> parallel (may shard across v7x's
            # two TCs; serial loop on single-TC v5e/v6e either way).
            dimension_semantics=("parallel",),
            # Covers in+out double-buffered 8 MiB blocks on every generation
            # (v5e default scoped limit is only 16 MiB; v7x physical is 64 MiB).
            vmem_limit_bytes=_VMEM_LIMIT_BYTES,
        ),
        cost_estimate=pl.CostEstimate(
            flops=0,
            transcendentals=0,
            bytes_accessed=2 * padded_total * dtype_bytes,
        ),
    )(x2d)

    out_flat = out2d.reshape(-1)
    if padded_total != total:
        out_flat = out_flat[:total]
    return out_flat.reshape(orig_shape)


if __name__ == "__main__":
    key = jax.random.PRNGKey(0)

    # Small shapes consistent with a UNet input: NCHW = [2, 4, 16, 16].
    in_channels, out_channels = 4, 4
    x = jax.random.normal(key, (2, in_channels, 16, 16), dtype=jnp.float32)

    # Pallas identity-copy kernel path.
    y = unet_forward(x, in_channels, out_channels)
    jax.block_until_ready(y)
    assert y.shape == x.shape and y.dtype == x.dtype
    assert bool(jnp.allclose(y, x))

    # Zero-traffic fast path (the real optimization for a zero-compute forward).
    y_skip = unet_forward(x, in_channels, out_channels, True)
    jax.block_until_ready(y_skip)
    assert bool(jnp.allclose(y_skip, x))

    # Exercise the rare non-multiple-of-128 lane-remainder fallback path.
    x_odd = jax.random.normal(jax.random.PRNGKey(1), (2, 3, 7, 9),
                              dtype=jnp.float32)
    y_odd = unet_forward(x_odd, 3, 3)
    jax.block_until_ready(y_odd)
    assert y_odd.shape == x_odd.shape and y_odd.dtype == x_odd.dtype
    assert bool(jnp.allclose(y_odd, x_odd))

    print("KERNEL_OK")
</pallas_src>

<mosaic_0001>
module attributes {stable_mosaic.version = 11 : i64} {
  func.func @_copy_kernel(%arg0: i32, %arg1: memref<16x128xf32, #tpu.memory_space<vmem>>, %arg2: memref<16x128xf32, #tpu.memory_space<vmem>>) attributes {dimension_semantics = [#tpu.dimension_semantics<parallel>], iteration_bounds = array<i64: 1>, scalar_prefetch = 0 : i64, scratch_operands = 0 : i64, tpu.core_type = #tpu.core_type<tc>, window_params = [{transform_indices = @transform_0, window_bounds = array<i64: 16, 128>}, {transform_indices = @transform_1, window_bounds = array<i64: 16, 128>}]} {
    %c0 = arith.constant 0 : index
    %c0_0 = arith.constant 0 : index
    %0 = vector.load %arg1[%c0, %c0_0] : memref<16x128xf32, #tpu.memory_space<vmem>>, vector<16x128xf32>
    %c0_1 = arith.constant 0 : index
    %c0_2 = arith.constant 0 : index
    %1 = vector.load %arg2[%c0_1, %c0_2] : memref<16x128xf32, #tpu.memory_space<vmem>>, vector<16x128xf32>
    tpu.vector_store %arg2[%c0_1, %c0_2], %0 {strides = array<i32>} : memref<16x128xf32, #tpu.memory_space<vmem>>, vector<16x128xf32>,
    return
  }
  func.func @transform_0(%arg0: i32) -> (i32, i32) {
    %c0_i32 = arith.constant 0 : i32
    %c0_i32_0 = arith.constant 0 : i32
    return %arg0, %c0_i32 : i32, i32
  }
  func.func @transform_1(%arg0: i32) -> (i32, i32) {
    %c0_i32 = arith.constant 0 : i32
    %c0_i32_0 = arith.constant 0 : i32
    return %arg0, %c0_i32 : i32, i32
  }
}

</mosaic_0001>

<llo_original>
// kernel: unet_forward.1
$region0: #{unet_forward.1}
  #allocation0 [shape = 'u32[]', space=smem, size = 0x4, offset = 0x4, fixed_abs, tag = 'smem constant byte address 0x4 - core index']
  #allocation1 [shape = 'u32[72,128]{1,0:T(1,128)}', space=vmem, size = 0x9000, scoped, tag = 'internal scratch']
  %s0 = inlined_call_operand.vmem [shape: f32[16,128], index: 0, kind: input, shape index: {}]
  %s1 = inlined_call_operand.vmem [shape: f32[16,128], index: 1, kind: output, shape index: {}]
  %s2 = sld [smem:[#allocation0]]
  $region14: #{unet_forward.1} parent=0
    _
  %s4 = ssub.s32 1, %s2
  %s5 = scalar_select 0, %s4, %s2
  // Predicated region
  $region2: #{unet_forward.1} parent=0 // pred_check
    _
  $region3: #{unet_forward.1} parent=0 // pred_check_branch
    %7 = sbr.rel (0) target = $region5
  $region4: #{unet_forward.1} parent=0 // pred_region
    _
  $region5: #{unet_forward.1} parent=0 // pred_fallthru
    _
  %v8 = vld [vmem:[%s0] sm:$0xff]
  %v9 = vld [vmem:[%s0 + $0x8] sm:$0xff]
  %10 = vst [vmem:[%s1] sm:$0xff] %v8
  %11 = vst [vmem:[%s1 + $0x8] sm:$0xff] %v9
  // Predicated region
  $region6: #{unet_forward.1} parent=0 // pred_check
    _
  $region7: #{unet_forward.1} parent=0 // pred_check_branch
    %13 = sbr.rel (0) target = $region9
  $region8: #{unet_forward.1} parent=0 // pred_region
    _
  $region9: #{unet_forward.1} parent=0 // pred_fallthru
    _
  // Predicated region
  $region10: #{unet_forward.1} parent=0 // pred_check
    _
  $region11: #{unet_forward.1} parent=0 // pred_check_branch
    %15 = sbr.rel (0) target = $region13
  $region12: #{unet_forward.1} parent=0 // pred_region
    _
  $region13: #{unet_forward.1} parent=0 // pred_fallthru
    _

</llo_original>
